<compile_context>
chip_gen: v6e
topology: v6e:2x2x1
jax: 0.10.0
libtpu: 0.0.40
codegen_flags: <defaults>
</compile_context>

<pallas_src>
import functools

import jax
import jax.numpy as jnp
from jax.experimental import pallas as pl
from jax.experimental.pallas import tpu as pltpu


def lstm_fc_kernel(x_ref, wih_t_ref, whh_t_ref, b_ref, wfc_t_ref, bfc_ref, out_ref,
                   *, T: int, B_pad: int):
    """Full LSTM recurrence over time + final FC layer.

    x_ref:     [T*B_pad, F_pad]  time-major, zero-padded inputs
    wih_t_ref: [F_pad, 4H]       W_ih^T (gate order i, f, g, o; g cols pre-scaled x2)
    whh_t_ref: [H, 4H]           W_hh^T (g cols pre-scaled x2)
    b_ref:     [1, 4H]           b_ih + b_hh (g lanes pre-scaled x2)
    wfc_t_ref: [H, 128]          fc weight transposed, zero-padded to 128 lanes
    bfc_ref:   [1, 128]          fc bias, zero-padded to 128 lanes
    out_ref:   [B_pad, 128]      prediction in lane 0
    """
    H = whh_t_ref.shape[0]
    w_hh_t = whh_t_ref[...]                                     # [H, 4H]

    # ---- Hoisted input projection (independent of h -> off the serial path).
    # One [T*B_pad, F_pad] @ [F_pad, 4H] MXU pass + a single bias add.
    xw = (
        jnp.dot(x_ref[...], wih_t_ref[...], preferred_element_type=jnp.float32)
        + b_ref[...]
    )                                                           # [T*B_pad, 4H]

    # Lane mask selecting the g-gate (tanh) lanes of the fused [B_pad, 4H] vreg.
    lane = jax.lax.broadcasted_iota(jnp.int32, (B_pad, 4 * H), 1)
    g_lanes = jnp.logical_and(lane >= 2 * H, lane < 3 * H)

    h = jnp.zeros((B_pad, H), jnp.float32)
    c = jnp.zeros((B_pad, H), jnp.float32)

    # T is static and small -> fully unrolled Python loop; the per-step slice of
    # xw is static and (B_pad % 8 == 0) aligned, so it is a free full-tile view.
    for t in range(T):
        gates = xw[t * B_pad:(t + 1) * B_pad, :] + jnp.dot(
            h, w_hh_t, preferred_element_type=jnp.float32)      # [B_pad, 4H]
        # Single full-vreg EUP pass: sigmoid for i/f/o lanes, and since the g
        # lanes were pre-scaled by 2, tanh(g) == 2*sigmoid(2g) - 1.
        sig = jax.nn.sigmoid(gates)
        act = jnp.where(g_lanes, 2.0 * sig - 1.0, sig)
        i_g = act[:, 0 * H:1 * H]
        f_g = act[:, 1 * H:2 * H]
        g_g = act[:, 2 * H:3 * H]
        o_g = act[:, 3 * H:4 * H]
        c = f_g * c + i_g * g_g
        h = o_g * jnp.tanh(c)

    # Dropout is identity in inference mode; lane-dense FC tail (unmasked vst).
    out_ref[...] = (
        jnp.dot(h, wfc_t_ref[...], preferred_element_type=jnp.float32)
        + bfc_ref[...]
    )


@jax.jit
def lstm_model_forward(x, w_ih, w_hh, b_ih, b_hh, w_fc, b_fc):
    """x: [B, T, F] float32. Returns [B, 1] float32 (matches the PyTorch module)."""
    B, T, F = x.shape
    H4 = w_ih.shape[0]
    H = H4 // 4

    # Pad batch to a multiple of 8 (all sublanes) and features to 8 (aligned K).
    B_pad = max(8, ((B + 7) // 8) * 8)
    F_pad = max(8, ((F + 7) // 8) * 8)
    N_pad = 128  # lane-dense output width for the FC tail

    # Time-major, flattened, zero-padded input: [T*B_pad, F_pad].
    x_tm = jnp.zeros((T, B_pad, F_pad), jnp.float32)
    x_tm = x_tm.at[:, :B, :F].set(jnp.transpose(x.astype(jnp.float32), (1, 0, 2)))
    x_tm = x_tm.reshape(T * B_pad, F_pad)

    # tanh(g) = 2*sigmoid(2g) - 1  ->  pre-scale the g-gate columns by 2.
    gate_scale = jnp.ones((4 * H,), jnp.float32).at[2 * H:3 * H].set(2.0)

    wih_t = jnp.zeros((F_pad, 4 * H), jnp.float32)
    wih_t = wih_t.at[:F, :].set(jnp.transpose(w_ih).astype(jnp.float32))
    wih_t = wih_t * gate_scale[None, :]                               # [F_pad, 4H]

    whh_t = jnp.transpose(w_hh).astype(jnp.float32) * gate_scale[None, :]  # [H, 4H]
    bias = ((b_ih + b_hh).astype(jnp.float32) * gate_scale).reshape(1, 4 * H)

    # Lane-dense FC tail: column 0 carries the real output, the rest are zeros.
    wfc_t = jnp.zeros((H, N_pad), jnp.float32).at[:, 0:1].set(
        jnp.transpose(w_fc).astype(jnp.float32))                      # [H, 128]
    bfc = jnp.zeros((1, N_pad), jnp.float32).at[0, 0].set(
        b_fc.astype(jnp.float32)[0])                                  # [1, 128]

    vmem_spec = pl.BlockSpec(memory_space=pltpu.MemorySpace.VMEM)
    kernel = functools.partial(lstm_fc_kernel, T=T, B_pad=B_pad)

    out = pl.pallas_call(
        kernel,
        out_shape=jax.ShapeDtypeStruct((B_pad, N_pad), jnp.float32),
        in_specs=[vmem_spec] * 6,
        out_specs=vmem_spec,
    )(x_tm, wih_t, whh_t, bias, wfc_t, bfc)
    return out[:B, 0:1]


def reference_forward(x, w_ih, w_hh, b_ih, b_hh, w_fc, b_fc):
    """Pure-JAX reference mirroring torch.nn.LSTM + Linear (eval mode)."""
    B, T, F = x.shape
    H = w_hh.shape[1]
    h = jnp.zeros((B, H), jnp.float32)
    c = jnp.zeros((B, H), jnp.float32)
    for t in range(T):
        gates = x[:, t, :] @ w_ih.T + b_ih + h @ w_hh.T + b_hh
        i_g = jax.nn.sigmoid(gates[:, 0 * H:1 * H])
        f_g = jax.nn.sigmoid(gates[:, 1 * H:2 * H])
        g_g = jnp.tanh(gates[:, 2 * H:3 * H])
        o_g = jax.nn.sigmoid(gates[:, 3 * H:4 * H])
        c = f_g * c + i_g * g_g
        h = o_g * jnp.tanh(c)
    return h @ w_fc.T + b_fc


if __name__ == "__main__":
    # Small shapes consistent with the module: input_size=6 is fixed by the model.
    B, T, F, H = 2, 8, 6, 32

    key = jax.random.PRNGKey(0)
    k_x, k1, k2, k3, k4, k5, k6 = jax.random.split(key, 7)

    bound = 1.0 / jnp.sqrt(jnp.float32(H))  # PyTorch default uniform init bound
    x = jax.random.normal(k_x, (B, T, F), dtype=jnp.float32)
    w_ih = jax.random.uniform(k1, (4 * H, F), minval=-bound, maxval=bound, dtype=jnp.float32)
    w_hh = jax.random.uniform(k2, (4 * H, H), minval=-bound, maxval=bound, dtype=jnp.float32)
    b_ih = jax.random.uniform(k3, (4 * H,), minval=-bound, maxval=bound, dtype=jnp.float32)
    b_hh = jax.random.uniform(k4, (4 * H,), minval=-bound, maxval=bound, dtype=jnp.float32)
    w_fc = jax.random.uniform(k5, (1, H), minval=-bound, maxval=bound, dtype=jnp.float32)
    b_fc = jax.random.uniform(k6, (1,), minval=-bound, maxval=bound, dtype=jnp.float32)

    pred = lstm_model_forward(x, w_ih, w_hh, b_ih, b_hh, w_fc, b_fc)
    pred = jax.block_until_ready(pred)

    ref = reference_forward(x, w_ih, w_hh, b_ih, b_hh, w_fc, b_fc)
    assert pred.shape == (B, 1), pred.shape
    assert jnp.allclose(pred, ref, atol=1e-5, rtol=1e-5), (pred, ref)

    print("KERNEL_OK")
</pallas_src>

<mosaic_0001>
module attributes {stable_mosaic.version = 11 : i64} {
  func.func @lstm_fc_kernel(%arg0: memref<64x8xf32, #tpu.memory_space<vmem>>, %arg1: memref<8x128xf32, #tpu.memory_space<vmem>>, %arg2: memref<32x128xf32, #tpu.memory_space<vmem>>, %arg3: memref<1x128xf32, #tpu.memory_space<vmem>>, %arg4: memref<32x128xf32, #tpu.memory_space<vmem>>, %arg5: memref<1x128xf32, #tpu.memory_space<vmem>>, %arg6: memref<8x128xf32, #tpu.memory_space<vmem>>) attributes {dimension_semantics = [], scalar_prefetch = 0 : i64, scratch_operands = 0 : i64, tpu.core_type = #tpu.core_type<tc>} {
    %c0 = arith.constant 0 : index
    %c0_0 = arith.constant 0 : index
    %0 = vector.load %arg2[%c0, %c0_0] : memref<32x128xf32, #tpu.memory_space<vmem>>, vector<32x128xf32>
    %c0_1 = arith.constant 0 : index
    %c0_2 = arith.constant 0 : index
    %1 = vector.load %arg0[%c0_1, %c0_2] : memref<64x8xf32, #tpu.memory_space<vmem>>, vector<64x8xf32>
    %c0_3 = arith.constant 0 : index
    %c0_4 = arith.constant 0 : index
    %2 = vector.load %arg1[%c0_3, %c0_4] : memref<8x128xf32, #tpu.memory_space<vmem>>, vector<8x128xf32>
    %cst = arith.constant dense<0.000000e+00> : vector<64x128xf32>
    %3 = tpu.matmul %1, %2, %cst {dimension_numbers = #tpu.dot_dimension_numbers<[1], [0], [0], [1], [0, 0, 1, 1], [], []>} : vector<64x8xf32>, vector<8x128xf32>, vector<64x128xf32> -> vector<64x128xf32>
    %c0_5 = arith.constant 0 : index
    %c0_6 = arith.constant 0 : index
    %4 = vector.load %arg3[%c0_5, %c0_6] : memref<1x128xf32, #tpu.memory_space<vmem>>, vector<1x128xf32>
    %5 = vector.broadcast %4 : vector<1x128xf32> to vector<64x128xf32>
    %6 = arith.addf %3, %5 : vector<64x128xf32>
    %7 = tpu.iota {dimensions = array<i32: 1>} : vector<8x128xi32>
    %c64_i32 = arith.constant 64 : i32
    %8 = vector.broadcast %c64_i32 : i32 to vector<8x128xi32>
    %9 = arith.cmpi sge, %7, %8 : vector<8x128xi32>
    %c96_i32 = arith.constant 96 : i32
    %10 = vector.broadcast %c96_i32 : i32 to vector<8x128xi32>
    %11 = arith.cmpi slt, %7, %10 : vector<8x128xi32>
    %12 = arith.andi %9, %11 : vector<8x128xi1>
    %cst_7 = arith.constant 0.000000e+00 : f32
    %13 = vector.broadcast %cst_7 : f32 to vector<8x32xf32>
    %cst_8 = arith.constant 0.000000e+00 : f32
    %14 = vector.broadcast %cst_8 : f32 to vector<8x32xf32>
    %15 = vector.extract_strided_slice %6 {offsets = [0, 0], sizes = [8, 128], strides = [1, 1]} : vector<64x128xf32> to vector<8x128xf32>
    %cst_9 = arith.constant dense<0.000000e+00> : vector<8x128xf32>
    %16 = tpu.matmul %13, %0, %cst_9 {dimension_numbers = #tpu.dot_dimension_numbers<[1], [0], [0], [1], [0, 0, 1, 1], [], []>} : vector<8x32xf32>, vector<32x128xf32>, vector<8x128xf32> -> vector<8x128xf32>
    %17 = arith.addf %15, %16 : vector<8x128xf32>
    %18 = arith.negf %17 : vector<8x128xf32>
    %19 = math.exp %18 : vector<8x128xf32>
    %cst_10 = arith.constant 1.000000e+00 : f32
    %20 = vector.broadcast %cst_10 : f32 to vector<8x128xf32>
    %21 = arith.addf %20, %19 : vector<8x128xf32>
    %22 = arith.divf %20, %21 : vector<8x128xf32>
    %cst_11 = arith.constant 2.000000e+00 : f32
    %23 = vector.broadcast %cst_11 : f32 to vector<8x128xf32>
    %24 = arith.mulf %23, %22 : vector<8x128xf32>
    %cst_12 = arith.constant 1.000000e+00 : f32
    %25 = vector.broadcast %cst_12 : f32 to vector<8x128xf32>
    %26 = arith.subf %24, %25 : vector<8x128xf32>
    %27 = arith.select %12, %26, %22 : vector<8x128xi1>, vector<8x128xf32>
    %28 = vector.extract_strided_slice %27 {offsets = [0, 0], sizes = [8, 32], strides = [1, 1]} : vector<8x128xf32> to vector<8x32xf32>
    %29 = vector.extract_strided_slice %27 {offsets = [0, 32], sizes = [8, 32], strides = [1, 1]} : vector<8x128xf32> to vector<8x32xf32>
    %30 = vector.extract_strided_slice %27 {offsets = [0, 64], sizes = [8, 32], strides = [1, 1]} : vector<8x128xf32> to vector<8x32xf32>
    %31 = vector.extract_strided_slice %27 {offsets = [0, 96], sizes = [8, 32], strides = [1, 1]} : vector<8x128xf32> to vector<8x32xf32>
    %32 = arith.mulf %29, %14 : vector<8x32xf32>
    %33 = arith.mulf %28, %30 : vector<8x32xf32>
    %34 = arith.addf %32, %33 : vector<8x32xf32>
    %35 = math.tanh %34 : vector<8x32xf32>
    %36 = arith.mulf %31, %35 : vector<8x32xf32>
    %37 = vector.extract_strided_slice %6 {offsets = [8, 0], sizes = [8, 128], strides = [1, 1]} : vector<64x128xf32> to vector<8x128xf32>
    %cst_13 = arith.constant dense<0.000000e+00> : vector<8x128xf32>
    %38 = tpu.matmul %36, %0, %cst_13 {dimension_numbers = #tpu.dot_dimension_numbers<[1], [0], [0], [1], [0, 0, 1, 1], [], []>} : vector<8x32xf32>, vector<32x128xf32>, vector<8x128xf32> -> vector<8x128xf32>
    %39 = arith.addf %37, %38 : vector<8x128xf32>
    %40 = arith.negf %39 : vector<8x128xf32>
    %41 = math.exp %40 : vector<8x128xf32>
    %cst_14 = arith.constant 1.000000e+00 : f32
    %42 = vector.broadcast %cst_14 : f32 to vector<8x128xf32>
    %43 = arith.addf %42, %41 : vector<8x128xf32>
    %44 = arith.divf %42, %43 : vector<8x128xf32>
    %cst_15 = arith.constant 2.000000e+00 : f32
    %45 = vector.broadcast %cst_15 : f32 to vector<8x128xf32>
    %46 = arith.mulf %45, %44 : vector<8x128xf32>
    %cst_16 = arith.constant 1.000000e+00 : f32
    %47 = vector.broadcast %cst_16 : f32 to vector<8x128xf32>
    %48 = arith.subf %46, %47 : vector<8x128xf32>
    %49 = arith.select %12, %48, %44 : vector<8x128xi1>, vector<8x128xf32>
    %50 = vector.extract_strided_slice %49 {offsets = [0, 0], sizes = [8, 32], strides = [1, 1]} : vector<8x128xf32> to vector<8x32xf32>
    %51 = vector.extract_strided_slice %49 {offsets = [0, 32], sizes = [8, 32], strides = [1, 1]} : vector<8x128xf32> to vector<8x32xf32>
    %52 = vector.extract_strided_slice %49 {offsets = [0, 64], sizes = [8, 32], strides = [1, 1]} : vector<8x128xf32> to vector<8x32xf32>
    %53 = vector.extract_strided_slice %49 {offsets = [0, 96], sizes = [8, 32], strides = [1, 1]} : vector<8x128xf32> to vector<8x32xf32>
    %54 = arith.mulf %51, %34 : vector<8x32xf32>
    %55 = arith.mulf %50, %52 : vector<8x32xf32>
    %56 = arith.addf %54, %55 : vector<8x32xf32>
    %57 = math.tanh %56 : vector<8x32xf32>
    %58 = arith.mulf %53, %57 : vector<8x32xf32>
    %59 = vector.extract_strided_slice %6 {offsets = [16, 0], sizes = [8, 128], strides = [1, 1]} : vector<64x128xf32> to vector<8x128xf32>
    %cst_17 = arith.constant dense<0.000000e+00> : vector<8x128xf32>
    %60 = tpu.matmul %58, %0, %cst_17 {dimension_numbers = #tpu.dot_dimension_numbers<[1], [0], [0], [1], [0, 0, 1, 1], [], []>} : vector<8x32xf32>, vector<32x128xf32>, vector<8x128xf32> -> vector<8x128xf32>
    %61 = arith.addf %59, %60 : vector<8x128xf32>
    %62 = arith.negf %61 : vector<8x128xf32>
    %63 = math.exp %62 : vector<8x128xf32>
    %cst_18 = arith.constant 1.000000e+00 : f32
    %64 = vector.broadcast %cst_18 : f32 to vector<8x128xf32>
    %65 = arith.addf %64, %63 : vector<8x128xf32>
    %66 = arith.divf %64, %65 : vector<8x128xf32>
    %cst_19 = arith.constant 2.000000e+00 : f32
    %67 = vector.broadcast %cst_19 : f32 to vector<8x128xf32>
    %68 = arith.mulf %67, %66 : vector<8x128xf32>
    %cst_20 = arith.constant 1.000000e+00 : f32
    %69 = vector.broadcast %cst_20 : f32 to vector<8x128xf32>
    %70 = arith.subf %68, %69 : vector<8x128xf32>
    %71 = arith.select %12, %70, %66 : vector<8x128xi1>, vector<8x128xf32>
    %72 = vector.extract_strided_slice %71 {offsets = [0, 0], sizes = [8, 32], strides = [1, 1]} : vector<8x128xf32> to vector<8x32xf32>
    %73 = vector.extract_strided_slice %71 {offsets = [0, 32], sizes = [8, 32], strides = [1, 1]} : vector<8x128xf32> to vector<8x32xf32>
    %74 = vector.extract_strided_slice %71 {offsets = [0, 64], sizes = [8, 32], strides = [1, 1]} : vector<8x128xf32> to vector<8x32xf32>
    %75 = vector.extract_strided_slice %71 {offsets = [0, 96], sizes = [8, 32], strides = [1, 1]} : vector<8x128xf32> to vector<8x32xf32>
    %76 = arith.mulf %73, %56 : vector<8x32xf32>
    %77 = arith.mulf %72, %74 : vector<8x32xf32>
    %78 = arith.addf %76, %77 : vector<8x32xf32>
    %79 = math.tanh %78 : vector<8x32xf32>
    %80 = arith.mulf %75, %79 : vector<8x32xf32>
    %81 = vector.extract_strided_slice %6 {offsets = [24, 0], sizes = [8, 128], strides = [1, 1]} : vector<64x128xf32> to vector<8x128xf32>
    %cst_21 = arith.constant dense<0.000000e+00> : vector<8x128xf32>
    %82 = tpu.matmul %80, %0, %cst_21 {dimension_numbers = #tpu.dot_dimension_numbers<[1], [0], [0], [1], [0, 0, 1, 1], [], []>} : vector<8x32xf32>, vector<32x128xf32>, vector<8x128xf32> -> vector<8x128xf32>
    %83 = arith.addf %81, %82 : vector<8x128xf32>
    %84 = arith.negf %83 : vector<8x128xf32>
    %85 = math.exp %84 : vector<8x128xf32>
    %cst_22 = arith.constant 1.000000e+00 : f32
    %86 = vector.broadcast %cst_22 : f32 to vector<8x128xf32>
    %87 = arith.addf %86, %85 : vector<8x128xf32>
    %88 = arith.divf %86, %87 : vector<8x128xf32>
    %cst_23 = arith.constant 2.000000e+00 : f32
    %89 = vector.broadcast %cst_23 : f32 to vector<8x128xf32>
    %90 = arith.mulf %89, %88 : vector<8x128xf32>
    %cst_24 = arith.constant 1.000000e+00 : f32
    %91 = vector.broadcast %cst_24 : f32 to vector<8x128xf32>
    %92 = arith.subf %90, %91 : vector<8x128xf32>
    %93 = arith.select %12, %92, %88 : vector<8x128xi1>, vector<8x128xf32>
    %94 = vector.extract_strided_slice %93 {offsets = [0, 0], sizes = [8, 32], strides = [1, 1]} : vector<8x128xf32> to vector<8x32xf32>
    %95 = vector.extract_strided_slice %93 {offsets = [0, 32], sizes = [8, 32], strides = [1, 1]} : vector<8x128xf32> to vector<8x32xf32>
    %96 = vector.extract_strided_slice %93 {offsets = [0, 64], sizes = [8, 32], strides = [1, 1]} : vector<8x128xf32> to vector<8x32xf32>
    %97 = vector.extract_strided_slice %93 {offsets = [0, 96], sizes = [8, 32], strides = [1, 1]} : vector<8x128xf32> to vector<8x32xf32>
    %98 = arith.mulf %95, %78 : vector<8x32xf32>
    %99 = arith.mulf %94, %96 : vector<8x32xf32>
    %100 = arith.addf %98, %99 : vector<8x32xf32>
    %101 = math.tanh %100 : vector<8x32xf32>
    %102 = arith.mulf %97, %101 : vector<8x32xf32>
    %103 = vector.extract_strided_slice %6 {offsets = [32, 0], sizes = [8, 128], strides = [1, 1]} : vector<64x128xf32> to vector<8x128xf32>
    %cst_25 = arith.constant dense<0.000000e+00> : vector<8x128xf32>
    %104 = tpu.matmul %102, %0, %cst_25 {dimension_numbers = #tpu.dot_dimension_numbers<[1], [0], [0], [1], [0, 0, 1, 1], [], []>} : vector<8x32xf32>, vector<32x128xf32>, vector<8x128xf32> -> vector<8x128xf32>
    %105 = arith.addf %103, %104 : vector<8x128xf32>
    %106 = arith.negf %105 : vector<8x128xf32>
    %107 = math.exp %106 : vector<8x128xf32>
    %cst_26 = arith.constant 1.000000e+00 : f32
    %108 = vector.broadcast %cst_26 : f32 to vector<8x128xf32>
    %109 = arith.addf %108, %107 : vector<8x128xf32>
    %110 = arith.divf %108, %109 : vector<8x128xf32>
    %cst_27 = arith.constant 2.000000e+00 : f32
    %111 = vector.broadcast %cst_27 : f32 to vector<8x128xf32>
    %112 = arith.mulf %111, %110 : vector<8x128xf32>
    %cst_28 = arith.constant 1.000000e+00 : f32
    %113 = vector.broadcast %cst_28 : f32 to vector<8x128xf32>
    %114 = arith.subf %112, %113 : vector<8x128xf32>
    %115 = arith.select %12, %114, %110 : vector<8x128xi1>, vector<8x128xf32>
    %116 = vector.extract_strided_slice %115 {offsets = [0, 0], sizes = [8, 32], strides = [1, 1]} : vector<8x128xf32> to vector<8x32xf32>
    %117 = vector.extract_strided_slice %115 {offsets = [0, 32], sizes = [8, 32], strides = [1, 1]} : vector<8x128xf32> to vector<8x32xf32>
    %118 = vector.extract_strided_slice %115 {offsets = [0, 64], sizes = [8, 32], strides = [1, 1]} : vector<8x128xf32> to vector<8x32xf32>
    %119 = vector.extract_strided_slice %115 {offsets = [0, 96], sizes = [8, 32], strides = [1, 1]} : vector<8x128xf32> to vector<8x32xf32>
    %120 = arith.mulf %117, %100 : vector<8x32xf32>
    %121 = arith.mulf %116, %118 : vector<8x32xf32>
    %122 = arith.addf %120, %121 : vector<8x32xf32>
    %123 = math.tanh %122 : vector<8x32xf32>
    %124 = arith.mulf %119, %123 : vector<8x32xf32>
    %125 = vector.extract_strided_slice %6 {offsets = [40, 0], sizes = [8, 128], strides = [1, 1]} : vector<64x128xf32> to vector<8x128xf32>
    %cst_29 = arith.constant dense<0.000000e+00> : vector<8x128xf32>
    %126 = tpu.matmul %124, %0, %cst_29 {dimension_numbers = #tpu.dot_dimension_numbers<[1], [0], [0], [1], [0, 0, 1, 1], [], []>} : vector<8x32xf32>, vector<32x128xf32>, vector<8x128xf32> -> vector<8x128xf32>
    %127 = arith.addf %125, %126 : vector<8x128xf32>
    %128 = arith.negf %127 : vector<8x128xf32>
    %129 = math.exp %128 : vector<8x128xf32>
    %cst_30 = arith.constant 1.000000e+00 : f32
    %130 = vector.broadcast %cst_30 : f32 to vector<8x128xf32>
    %131 = arith.addf %130, %129 : vector<8x128xf32>
    %132 = arith.divf %130, %131 : vector<8x128xf32>
    %cst_31 = arith.constant 2.000000e+00 : f32
    %133 = vector.broadcast %cst_31 : f32 to vector<8x128xf32>
    %134 = arith.mulf %133, %132 : vector<8x128xf32>
    %cst_32 = arith.constant 1.000000e+00 : f32
    %135 = vector.broadcast %cst_32 : f32 to vector<8x128xf32>
    %136 = arith.subf %134, %135 : vector<8x128xf32>
    %137 = arith.select %12, %136, %132 : vector<8x128xi1>, vector<8x128xf32>
    %138 = vector.extract_strided_slice %137 {offsets = [0, 0], sizes = [8, 32], strides = [1, 1]} : vector<8x128xf32> to vector<8x32xf32>
    %139 = vector.extract_strided_slice %137 {offsets = [0, 32], sizes = [8, 32], strides = [1, 1]} : vector<8x128xf32> to vector<8x32xf32>
    %140 = vector.extract_strided_slice %137 {offsets = [0, 64], sizes = [8, 32], strides = [1, 1]} : vector<8x128xf32> to vector<8x32xf32>
    %141 = vector.extract_strided_slice %137 {offsets = [0, 96], sizes = [8, 32], strides = [1, 1]} : vector<8x128xf32> to vector<8x32xf32>
    %142 = arith.mulf %139, %122 : vector<8x32xf32>
    %143 = arith.mulf %138, %140 : vector<8x32xf32>
    %144 = arith.addf %142, %143 : vector<8x32xf32>
    %145 = math.tanh %144 : vector<8x32xf32>
    %146 = arith.mulf %141, %145 : vector<8x32xf32>
    %147 = vector.extract_strided_slice %6 {offsets = [48, 0], sizes = [8, 128], strides = [1, 1]} : vector<64x128xf32> to vector<8x128xf32>
    %cst_33 = arith.constant dense<0.000000e+00> : vector<8x128xf32>
    %148 = tpu.matmul %146, %0, %cst_33 {dimension_numbers = #tpu.dot_dimension_numbers<[1], [0], [0], [1], [0, 0, 1, 1], [], []>} : vector<8x32xf32>, vector<32x128xf32>, vector<8x128xf32> -> vector<8x128xf32>
    %149 = arith.addf %147, %148 : vector<8x128xf32>
    %150 = arith.negf %149 : vector<8x128xf32>
    %151 = math.exp %150 : vector<8x128xf32>
    %cst_34 = arith.constant 1.000000e+00 : f32
    %152 = vector.broadcast %cst_34 : f32 to vector<8x128xf32>
    %153 = arith.addf %152, %151 : vector<8x128xf32>
    %154 = arith.divf %152, %153 : vector<8x128xf32>
    %cst_35 = arith.constant 2.000000e+00 : f32
    %155 = vector.broadcast %cst_35 : f32 to vector<8x128xf32>
    %156 = arith.mulf %155, %154 : vector<8x128xf32>
    %cst_36 = arith.constant 1.000000e+00 : f32
    %157 = vector.broadcast %cst_36 : f32 to vector<8x128xf32>
    %158 = arith.subf %156, %157 : vector<8x128xf32>
    %159 = arith.select %12, %158, %154 : vector<8x128xi1>, vector<8x128xf32>
    %160 = vector.extract_strided_slice %159 {offsets = [0, 0], sizes = [8, 32], strides = [1, 1]} : vector<8x128xf32> to vector<8x32xf32>
    %161 = vector.extract_strided_slice %159 {offsets = [0, 32], sizes = [8, 32], strides = [1, 1]} : vector<8x128xf32> to vector<8x32xf32>
    %162 = vector.extract_strided_slice %159 {offsets = [0, 64], sizes = [8, 32], strides = [1, 1]} : vector<8x128xf32> to vector<8x32xf32>
    %163 = vector.extract_strided_slice %159 {offsets = [0, 96], sizes = [8, 32], strides = [1, 1]} : vector<8x128xf32> to vector<8x32xf32>
    %164 = arith.mulf %161, %144 : vector<8x32xf32>
    %165 = arith.mulf %160, %162 : vector<8x32xf32>
    %166 = arith.addf %164, %165 : vector<8x32xf32>
    %167 = math.tanh %166 : vector<8x32xf32>
    %168 = arith.mulf %163, %167 : vector<8x32xf32>
    %169 = vector.extract_strided_slice %6 {offsets = [56, 0], sizes = [8, 128], strides = [1, 1]} : vector<64x128xf32> to vector<8x128xf32>
    %cst_37 = arith.constant dense<0.000000e+00> : vector<8x128xf32>
    %170 = tpu.matmul %168, %0, %cst_37 {dimension_numbers = #tpu.dot_dimension_numbers<[1], [0], [0], [1], [0, 0, 1, 1], [], []>} : vector<8x32xf32>, vector<32x128xf32>, vector<8x128xf32> -> vector<8x128xf32>
    %171 = arith.addf %169, %170 : vector<8x128xf32>
    %172 = arith.negf %171 : vector<8x128xf32>
    %173 = math.exp %172 : vector<8x128xf32>
    %cst_38 = arith.constant 1.000000e+00 : f32
    %174 = vector.broadcast %cst_38 : f32 to vector<8x128xf32>
    %175 = arith.addf %174, %173 : vector<8x128xf32>
    %176 = arith.divf %174, %175 : vector<8x128xf32>
    %cst_39 = arith.constant 2.000000e+00 : f32
    %177 = vector.broadcast %cst_39 : f32 to vector<8x128xf32>
    %178 = arith.mulf %177, %176 : vector<8x128xf32>
    %cst_40 = arith.constant 1.000000e+00 : f32
    %179 = vector.broadcast %cst_40 : f32 to vector<8x128xf32>
    %180 = arith.subf %178, %179 : vector<8x128xf32>
    %181 = arith.select %12, %180, %176 : vector<8x128xi1>, vector<8x128xf32>
    %182 = vector.extract_strided_slice %181 {offsets = [0, 0], sizes = [8, 32], strides = [1, 1]} : vector<8x128xf32> to vector<8x32xf32>
    %183 = vector.extract_strided_slice %181 {offsets = [0, 32], sizes = [8, 32], strides = [1, 1]} : vector<8x128xf32> to vector<8x32xf32>
    %184 = vector.extract_strided_slice %181 {offsets = [0, 64], sizes = [8, 32], strides = [1, 1]} : vector<8x128xf32> to vector<8x32xf32>
    %185 = vector.extract_strided_slice %181 {offsets = [0, 96], sizes = [8, 32], strides = [1, 1]} : vector<8x128xf32> to vector<8x32xf32>
    %186 = arith.mulf %183, %166 : vector<8x32xf32>
    %187 = arith.mulf %182, %184 : vector<8x32xf32>
    %188 = arith.addf %186, %187 : vector<8x32xf32>
    %189 = math.tanh %188 : vector<8x32xf32>
    %190 = arith.mulf %185, %189 : vector<8x32xf32>
    %c0_41 = arith.constant 0 : index
    %c0_42 = arith.constant 0 : index
    %191 = vector.load %arg4[%c0_41, %c0_42] : memref<32x128xf32, #tpu.memory_space<vmem>>, vector<32x128xf32>
    %cst_43 = arith.constant dense<0.000000e+00> : vector<8x128xf32>
    %192 = tpu.matmul %190, %191, %cst_43 {dimension_numbers = #tpu.dot_dimension_numbers<[1], [0], [0], [1], [0, 0, 1, 1], [], []>} : vector<8x32xf32>, vector<32x128xf32>, vector<8x128xf32> -> vector<8x128xf32>
    %c0_44 = arith.constant 0 : index
    %c0_45 = arith.constant 0 : index
    %193 = vector.load %arg5[%c0_44, %c0_45] : memref<1x128xf32, #tpu.memory_space<vmem>>, vector<1x128xf32>
    %194 = vector.broadcast %193 : vector<1x128xf32> to vector<8x128xf32>
    %195 = arith.addf %192, %194 : vector<8x128xf32>
    %c0_46 = arith.constant 0 : index
    %c0_47 = arith.constant 0 : index
    %196 = vector.load %arg6[%c0_46, %c0_47] : memref<8x128xf32, #tpu.memory_space<vmem>>, vector<8x128xf32>
    tpu.vector_store %arg6[%c0_46, %c0_47], %195 {strides = array<i32>} : memref<8x128xf32, #tpu.memory_space<vmem>>, vector<8x128xf32>,
    return
  }
}

</mosaic_0001>

<llo_original>
// kernel: lstm_model_forward.1
$region0: #{lstm_model_forward.1}
  #allocation0 [shape = 'u32[]', space=smem, size = 0x4, offset = 0x4, fixed_abs, tag = 'smem constant byte address 0x4 - core index']
  #allocation1 [shape = 'u32[144,128]{1,0:T(1,128)}', space=vmem, size = 0x12000, scoped, tag = 'internal scratch']
  %s0 = inlined_call_operand.vmem [shape: f32[64,8], index: 0, kind: input, shape index: {}]
  %s1 = inlined_call_operand.vmem [shape: f32[8,128], index: 1, kind: input, shape index: {}]
  %s2 = inlined_call_operand.vmem [shape: f32[32,128], index: 2, kind: input, shape index: {}]
  %s3 = inlined_call_operand.vmem [shape: f32[1,128], index: 3, kind: input, shape index: {}]
  %s4 = inlined_call_operand.vmem [shape: f32[32,128], index: 4, kind: input, shape index: {}]
  %s5 = inlined_call_operand.vmem [shape: f32[1,128], index: 5, kind: input, shape index: {}]
  %s6 = inlined_call_operand.vmem [shape: f32[8,128], index: 6, kind: output, shape index: {}]
  %s7 = sld [smem:[#allocation0]]
  $region34: #{lstm_model_forward.1} parent=0
    _
  %s9 = ssub.s32 1, %s7
  %s10 = scalar_select 0, %s9, %s7
  // Predicated region
  $region2: #{lstm_model_forward.1} parent=0 // pred_check
    _
  $region3: #{lstm_model_forward.1} parent=0 // pred_check_branch
    %12 = sbr.rel (0) target = $region5
  $region4: #{lstm_model_forward.1} parent=0 // pred_region
    _
  $region5: #{lstm_model_forward.1} parent=0 // pred_fallthru
    _
  // Predicated region
  $region6: #{lstm_model_forward.1} parent=0 // pred_check
    _
  $region7: #{lstm_model_forward.1} parent=0 // pred_check_branch
    %14 = sbr.rel (0) target = $region9
  $region8: #{lstm_model_forward.1} parent=0 // pred_region
    _
  $region9: #{lstm_model_forward.1} parent=0 // pred_fallthru
    _
  // Predicated region
  $region10: #{lstm_model_forward.1} parent=0 // pred_check
    _
  $region11: #{lstm_model_forward.1} parent=0 // pred_check_branch
    %16 = sbr.rel (0) target = $region13
  $region12: #{lstm_model_forward.1} parent=0 // pred_region
    _
  $region13: #{lstm_model_forward.1} parent=0 // pred_fallthru
    _
  // Predicated region
  $region14: #{lstm_model_forward.1} parent=0 // pred_check
    _
  $region15: #{lstm_model_forward.1} parent=0 // pred_check_branch
    %18 = sbr.rel (0) target = $region17
  $region16: #{lstm_model_forward.1} parent=0 // pred_region
    _
  $region17: #{lstm_model_forward.1} parent=0 // pred_fallthru
    _
  // Predicated region
  $region18: #{lstm_model_forward.1} parent=0 // pred_check
    _
  $region19: #{lstm_model_forward.1} parent=0 // pred_check_branch
    %20 = sbr.rel (0) target = $region21
  $region20: #{lstm_model_forward.1} parent=0 // pred_region
    _
  $region21: #{lstm_model_forward.1} parent=0 // pred_fallthru
    _
  // Predicated region
  $region22: #{lstm_model_forward.1} parent=0 // pred_check
    _
  $region23: #{lstm_model_forward.1} parent=0 // pred_check_branch
    %22 = sbr.rel (0) target = $region25
  $region24: #{lstm_model_forward.1} parent=0 // pred_region
    _
  $region25: #{lstm_model_forward.1} parent=0 // pred_fallthru
    _
  %v23 = vld [vmem:[%s2] sm:$0xff]
  %v24 = vld [vmem:[%s2 + $0x8] sm:$0xff]
  %v25 = vld [vmem:[%s2 + $0x10] sm:$0xff]
  %v26 = vld [vmem:[%s2 + $0x18] sm:$0xff]
  %v27 = vld [vmem:[%s0] sm:$0xff]
  %v28 = vld [vmem:[%s0 + $0x8] sm:$0xff]
  %v29 = vld [vmem:[%s0 + $0x10] sm:$0xff]
  %v30 = vld [vmem:[%s0 + $0x18] sm:$0xff]
  %v31 = vld [vmem:[%s0 + $0x20] sm:$0xff]
  %v32 = vld [vmem:[%s0 + $0x28] sm:$0xff]
  %v33 = vld [vmem:[%s0 + $0x30] sm:$0xff]
  %v34 = vld [vmem:[%s0 + $0x38] sm:$0xff]
  %v35 = vld [vmem:[%s1] sm:$0xff]
  %v36 = vld [vmem:[%s3] sm:$0x1]
  %v38 = vlaneseq
  %v39 = vshrl.u32 %v38, 7
  %v40 = vsub.s32 0, %v39
  %v41 = vrot.slane %v36, %v40
  %vm43 = vcmask 64512
  %v45 = vsel %vm43, %v27, 0
  %v48 = vsel %vm43, %v28, 0
  %v51 = vsel %vm43, %v29, 0
  %v54 = vsel %vm43, %v30, 0
  %v57 = vsel %vm43, %v31, 0
  %v60 = vsel %vm43, %v32, 0
  %v63 = vsel %vm43, %v33, 0
  %v66 = vsel %vm43, %v34, 0
  %68 = vmatprep.subr.mxu0 0.0
  %69 = vmatpush1.msra.mxu0 0.0
  %70 = vmatprep.subr.mxu0 0.0
  %71 = vmatpush1.msra.mxu0 0.0
  %72 = vmatprep.subr.mxu0 0.0
  %73 = vmatpush1.msra.mxu0 0.0
  %74 = vmatprep.subr.mxu0 0.0
  %75 = vmatpush1.msra.mxu0 0.0
  %76 = vmatprep.subr.mxu0 0.0
  %77 = vmatpush1.msra.mxu0 0.0
  %78 = vmatprep.subr.mxu0 0.0
  %79 = vmatpush1.msra.mxu0 0.0
  %80 = vmatprep.subr.mxu0 0.0
  %81 = vmatpush1.msra.mxu0 0.0
  %82 = vmatprep.subr.mxu0 0.0
  %83 = vmatpush1.msra.mxu0 0.0
  %84 = vmatprep.subr.mxu0 0.0
  %85 = vmatpush1.msra.mxu0 0.0
  %86 = vmatprep.subr.mxu0 0.0
  %87 = vmatpush1.msra.mxu0 0.0
  %88 = vmatprep.subr.mxu0 0.0
  %89 = vmatpush1.msra.mxu0 0.0
  %90 = vmatprep.subr.mxu0 0.0
  %91 = vmatpush1.msra.mxu0 0.0
  %92 = vmatprep.subr.mxu0 0.0
  %93 = vmatpush1.msra.mxu0 0.0
  %94 = vmatprep.subr.mxu0 0.0
  %95 = vmatpush1.msra.mxu0 0.0
  %96 = vmatprep.subr.mxu0 0.0
  %97 = vmatpush1.msra.mxu0 0.0
  %98 = vmatprep.subr.mxu0 0.0
  %99 = vmatpush1.msra.mxu0 %v35
  %100 = vmatprep.subr.mxu0 0.0
  %101 = vmatpush2.msra.mxu0 0.0
  %102 = vmatprep.subr.mxu0 0.0
  %103 = vmatpush2.msra.mxu0 0.0
  %104 = vmatprep.subr.mxu0 0.0
  %105 = vmatpush2.msra.mxu0 0.0
  %106 = vmatprep.subr.mxu0 0.0
  %107 = vmatpush2.msra.mxu0 0.0
  %108 = vmatprep.subr.mxu0 0.0
  %109 = vmatpush2.msra.mxu0 0.0
  %110 = vmatprep.subr.mxu0 0.0
  %111 = vmatpush2.msra.mxu0 0.0
  %112 = vmatprep.subr.mxu0 0.0
  %113 = vmatpush2.msra.mxu0 0.0
  %114 = vmatprep.subr.mxu0 0.0
  %115 = vmatpush2.msra.mxu0 0.0
  %116 = vmatprep.subr.mxu0 0.0
  %117 = vmatpush2.msra.mxu0 0.0
  %118 = vmatprep.subr.mxu0 0.0
  %119 = vmatpush2.msra.mxu0 0.0
  %120 = vmatprep.subr.mxu0 0.0
  %121 = vmatpush2.msra.mxu0 0.0
  %122 = vmatprep.subr.mxu0 0.0
  %123 = vmatpush2.msra.mxu0 0.0
  %124 = vmatprep.subr.mxu0 0.0
  %125 = vmatpush2.msra.mxu0 0.0
  %126 = vmatprep.subr.mxu0 0.0
  %127 = vmatpush2.msra.mxu0 0.0
  %128 = vmatprep.subr.mxu0 0.0
  %129 = vmatpush2.msra.mxu0 0.0
  %130 = vmatprep.subr.mxu0 0.0
  %131 = vmatpush2.msra.mxu0 0.0
  %132 = vmatprep.mubr.f32.mxu0 0.0
  %133 = vmatmul.mubr.f32.gmra.mxu0 %v45
  %v134 = vpop.f32.mrf.mxu0
  %v135 = vadd.f32 %v41, %v134
  %v136 = vpop.f32.mrf.mxu0
  %137 = vmatprep.mubr.f32.mxu0 0.0
  %138 = vmatmul.mubr.f32.gmra.mxu0 %v48
  %v139 = vpop.f32.mrf.mxu0
  %v140 = vadd.f32 %v41, %v139
  %v141 = vpop.f32.mrf.mxu0
  %142 = vmatprep.mubr.f32.mxu0 0.0
  %143 = vmatmul.mubr.f32.gmra.mxu0 %v51
  %v144 = vpop.f32.mrf.mxu0
  %v145 = vadd.f32 %v41, %v144
  %v146 = vpop.f32.mrf.mxu0
  %147 = vmatprep.mubr.f32.mxu0 0.0
  %148 = vmatmul.mubr.f32.gmra.mxu0 %v54
  %v149 = vpop.f32.mrf.mxu0
  %v150 = vadd.f32 %v41, %v149
  %v151 = vpop.f32.mrf.mxu0
  %152 = vmatprep.mubr.f32.mxu0 0.0
  %153 = vmatmul.mubr.f32.gmra.mxu0 %v57
  %v154 = vpop.f32.mrf.mxu0
  %v155 = vadd.f32 %v41, %v154
  %v156 = vpop.f32.mrf.mxu0
  %157 = vmatprep.mubr.f32.mxu0 0.0
  %158 = vmatmul.mubr.f32.gmra.mxu0 %v60
  %v159 = vpop.f32.mrf.mxu0
  %v160 = vadd.f32 %v41, %v159
  %v161 = vpop.f32.mrf.mxu0
  %162 = vmatprep.mubr.f32.mxu0 0.0
  %163 = vmatmul.mubr.f32.gmra.mxu0 %v63
  %v164 = vpop.f32.mrf.mxu0
  %v165 = vadd.f32 %v41, %v164
  %v166 = vpop.f32.mrf.mxu0
  %167 = vmatprep.mubr.f32.mxu0 0.0
  %168 = vmatmul.mubr.f32.gmra.mxu0 %v66
  %v169 = vpop.f32.mrf.mxu0
  %v170 = vadd.f32 %v41, %v169
  %v171 = vpop.f32.mrf.mxu0
  %172 = vdwg.mxu0
  %v173 = vlaneseq
  %v174 = vand.u32 %v173, 127
  %vm175 = vcmp.ge.s32.totalorder %v174, 64
  %vm176 = vcmp.lt.s32.totalorder %v174, 96
  %vm177 = vmand %vm175, %vm176
  %vm178 = vcmask 261120
  %v180 = vsel %vm178, 0.0, 0
  %182 = vmatprep.subr.mxu0 0.0
  %183 = vmatpush1.msra.mxu0 0.0
  %184 = vmatprep.subr.mxu0 0.0
  %185 = vmatpush1.msra.mxu0 0.0
  %186 = vmatprep.subr.mxu0 0.0
  %187 = vmatpush1.msra.mxu0 0.0
  %188 = vmatprep.subr.mxu0 0.0
  %189 = vmatpush1.msra.mxu0 0.0
  %190 = vmatprep.subr.mxu0 0.0
  %191 = vmatpush1.msra.mxu0 0.0
  %192 = vmatprep.subr.mxu0 0.0
  %193 = vmatpush1.msra.mxu0 0.0
  %194 = vmatprep.subr.mxu0 0.0
  %195 = vmatpush1.msra.mxu0 0.0
  %196 = vmatprep.subr.mxu0 0.0
  %197 = vmatpush1.msra.mxu0 0.0
  %198 = vmatprep.subr.mxu0 0.0
  %199 = vmatpush1.msra.mxu0 0.0
  %200 = vmatprep.subr.mxu0 0.0
  %201 = vmatpush1.msra.mxu0 0.0
  %202 = vmatprep.subr.mxu0 0.0
  %203 = vmatpush1.msra.mxu0 0.0
  %204 = vmatprep.subr.mxu0 0.0
  %205 = vmatpush1.msra.mxu0 0.0
  %206 = vmatprep.subr.mxu0 0.0
  %207 = vmatpush1.msra.mxu0 %v26
  %208 = vmatprep.subr.mxu0 0.0
  %209 = vmatpush1.msra.mxu0 %v25
  %210 = vmatprep.subr.mxu0 0.0
  %211 = vmatpush1.msra.mxu0 %v24
  %212 = vmatprep.subr.mxu0 0.0
  %213 = vmatpush1.msra.mxu0 %v23
  %214 = vmatprep.subr.mxu0 0.0
  %215 = vmatpush2.msra.mxu0 0.0
  %216 = vmatprep.subr.mxu0 0.0
  %217 = vmatpush2.msra.mxu0 0.0
  %218 = vmatprep.subr.mxu0 0.0
  %219 = vmatpush2.msra.mxu0 0.0
  %220 = vmatprep.subr.mxu0 0.0
  %221 = vmatpush2.msra.mxu0 0.0
  %222 = vmatprep.subr.mxu0 0.0
  %223 = vmatpush2.msra.mxu0 0.0
  %224 = vmatprep.subr.mxu0 0.0
  %225 = vmatpush2.msra.mxu0 0.0
  %226 = vmatprep.subr.mxu0 0.0
  %227 = vmatpush2.msra.mxu0 0.0
  %228 = vmatprep.subr.mxu0 0.0
  %229 = vmatpush2.msra.mxu0 0.0
  %230 = vmatprep.subr.mxu0 0.0
  %231 = vmatpush2.msra.mxu0 0.0
  %232 = vmatprep.subr.mxu0 0.0
  %233 = vmatpush2.msra.mxu0 0.0
  %234 = vmatprep.subr.mxu0 0.0
  %235 = vmatpush2.msra.mxu0 0.0
  %236 = vmatprep.subr.mxu0 0.0
  %237 = vmatpush2.msra.mxu0 0.0
  %238 = vmatprep.subr.mxu0 0.0
  %239 = vmatpush2.msra.mxu0 0.0
  %240 = vmatprep.subr.mxu0 0.0
  %241 = vmatpush2.msra.mxu0 0.0
  %242 = vmatprep.subr.mxu0 0.0
  %243 = vmatpush2.msra.mxu0 0.0
  %244 = vmatprep.subr.mxu0 0.0
  %245 = vmatpush2.msra.mxu0 0.0
  %246 = vmatprep.mubr.f32.mxu0 0.0
  %247 = vmatmul.mubr.f32.gmra.mxu0 %v180
  %v248 = vpop.f32.mrf.mxu0
  %v249 = vadd.f32 0.0, %v248
  %v250 = vpop.f32.mrf.mxu0
  %251 = vdwg.mxu0
  %v252 = vadd.f32 %v135, %v249
  %v253 = vxor.u32 %v252, 2147483648
  %v254 = vmul.f32 %v253, 1.442695
  %v255 = vpow.pop %v254
  %v256 = vadd.f32 %v255, 1.0
  %v257 = vrcp.pop %v256
  %v258 = vmul.f32 1.0, %v257
  %v259 = vmul.f32 %v258, 2.0
  %v260 = vsub.f32 %v259, 1.0
  %v261 = vsel %vm177, %v260, %v258
  %v262 = vmul.f32 %v261, 0.0
  %264 = vrot.lane.b32.xlu0 %v261, 64
  %v265 = vpop.permute.xlu0 %264
  %v267 = vmul.f32 %v261, %v265
  %269 = vrot.lane.b32.xlu0 %v267, 32
  %v270 = vpop.permute.xlu0 %269
  %v272 = vadd.f32 %v262, %v270
  %v273 = vtanh.pop %v272
  %275 = vrot.lane.b32.xlu0 %v273, 64
  %v276 = vpop.permute.xlu0 %275
  %v278 = vmul.f32 %v261, %v276
  %280 = vrot.lane.b32.xlu0 %v278, 32
  %v281 = vpop.permute.xlu0 %280
  %v282 = vsel %vm178, %v281, 0
  %284 = vmatprep.subr.mxu0 0.0
  %285 = vmatpush1.msra.mxu0 0.0
  %286 = vmatprep.subr.mxu0 0.0
  %287 = vmatpush1.msra.mxu0 0.0
  %288 = vmatprep.subr.mxu0 0.0
  %289 = vmatpush1.msra.mxu0 0.0
  %290 = vmatprep.subr.mxu0 0.0
  %291 = vmatpush1.msra.mxu0 0.0
  %292 = vmatprep.subr.mxu0 0.0
  %293 = vmatpush1.msra.mxu0 0.0
  %294 = vmatprep.subr.mxu0 0.0
  %295 = vmatpush1.msra.mxu0 0.0
  %296 = vmatprep.subr.mxu0 0.0
  %297 = vmatpush1.msra.mxu0 0.0
  %298 = vmatprep.subr.mxu0 0.0
  %299 = vmatpush1.msra.mxu0 0.0
  %300 = vmatprep.subr.mxu0 0.0
  %301 = vmatpush1.msra.mxu0 0.0
  %302 = vmatprep.subr.mxu0 0.0
  %303 = vmatpush1.msra.mxu0 0.0
  %304 = vmatprep.subr.mxu0 0.0
  %305 = vmatpush1.msra.mxu0 0.0
  %306 = vmatprep.subr.mxu0 0.0
  %307 = vmatpush1.msra.mxu0 0.0
  %308 = vmatprep.subr.mxu0 0.0
  %309 = vmatpush1.msra.mxu0 %v26
  %310 = vmatprep.subr.mxu0 0.0
  %311 = vmatpush1.msra.mxu0 %v25
  %312 = vmatprep.subr.mxu0 0.0
  %313 = vmatpush1.msra.mxu0 %v24
  %314 = vmatprep.subr.mxu0 0.0
  %315 = vmatpush1.msra.mxu0 %v23
  %316 = vmatprep.subr.mxu0 0.0
  %317 = vmatpush2.msra.mxu0 0.0
  %318 = vmatprep.subr.mxu0 0.0
  %319 = vmatpush2.msra.mxu0 0.0
  %320 = vmatprep.subr.mxu0 0.0
  %321 = vmatpush2.msra.mxu0 0.0
  %322 = vmatprep.subr.mxu0 0.0
  %323 = vmatpush2.msra.mxu0 0.0
  %324 = vmatprep.subr.mxu0 0.0
  %325 = vmatpush2.msra.mxu0 0.0
  %326 = vmatprep.subr.mxu0 0.0
  %327 = vmatpush2.msra.mxu0 0.0
  %328 = vmatprep.subr.mxu0 0.0
  %329 = vmatpush2.msra.mxu0 0.0
  %330 = vmatprep.subr.mxu0 0.0
  %331 = vmatpush2.msra.mxu0 0.0
  %332 = vmatprep.subr.mxu0 0.0
  %333 = vmatpush2.msra.mxu0 0.0
  %334 = vmatprep.subr.mxu0 0.0
  %335 = vmatpush2.msra.mxu0 0.0
  %336 = vmatprep.subr.mxu0 0.0
  %337 = vmatpush2.msra.mxu0 0.0
  %338 = vmatprep.subr.mxu0 0.0
  %339 = vmatpush2.msra.mxu0 0.0
  %340 = vmatprep.subr.mxu0 0.0
  %341 = vmatpush2.msra.mxu0 0.0
  %342 = vmatprep.subr.mxu0 0.0
  %343 = vmatpush2.msra.mxu0 0.0
  %344 = vmatprep.subr.mxu0 0.0
  %345 = vmatpush2.msra.mxu0 0.0
  %346 = vmatprep.subr.mxu0 0.0
  %347 = vmatpush2.msra.mxu0 0.0
  %348 = vmatprep.mubr.f32.mxu0 0.0
  %349 = vmatmul.mubr.f32.gmra.mxu0 %v282
  %v350 = vpop.f32.mrf.mxu0
  %v351 = vadd.f32 0.0, %v350
  %v352 = vpop.f32.mrf.mxu0
  %353 = vdwg.mxu0
  %v354 = vadd.f32 %v140, %v351
  %v355 = vxor.u32 %v354, 2147483648
  %v356 = vmul.f32 %v355, 1.442695
  %v357 = vpow.pop %v356
  %v358 = vadd.f32 %v357, 1.0
  %v359 = vrcp.pop %v358
  %v360 = vmul.f32 1.0, %v359
  %v361 = vmul.f32 %v360, 2.0
  %v362 = vsub.f32 %v361, 1.0
  %v363 = vsel %vm177, %v362, %v360
  %v364 = vmul.f32 %v363, %v272
  %366 = vrot.lane.b32.xlu0 %v363, 64
  %v367 = vpop.permute.xlu0 %366
  %v369 = vmul.f32 %v363, %v367
  %371 = vrot.lane.b32.xlu0 %v369, 32
  %v372 = vpop.permute.xlu0 %371
  %v374 = vadd.f32 %v364, %v372
  %v375 = vtanh.pop %v374
  %377 = vrot.lane.b32.xlu0 %v375, 64
  %v378 = vpop.permute.xlu0 %377
  %v380 = vmul.f32 %v363, %v378
  %382 = vrot.lane.b32.xlu0 %v380, 32
  %v383 = vpop.permute.xlu0 %382
  %v384 = vsel %vm178, %v383, 0
  %386 = vmatprep.subr.mxu0 0.0
  %387 = vmatpush1.msra.mxu0 0.0
  %388 = vmatprep.subr.mxu0 0.0
  %389 = vmatpush1.msra.mxu0 0.0
  %390 = vmatprep.subr.mxu0 0.0
  %391 = vmatpush1.msra.mxu0 0.0
  %392 = vmatprep.subr.mxu0 0.0
  %393 = vmatpush1.msra.mxu0 0.0
  %394 = vmatprep.subr.mxu0 0.0
  %395 = vmatpush1.msra.mxu0 0.0
  %396 = vmatprep.subr.mxu0 0.0
  %397 = vmatpush1.msra.mxu0 0.0
  %398 = vmatprep.subr.mxu0 0.0
  %399 = vmatpush1.msra.mxu0 0.0
  %400 = vmatprep.subr.mxu0 0.0
  %401 = vmatpush1.msra.mxu0 0.0
  %402 = vmatprep.subr.mxu0 0.0
  %403 = vmatpush1.msra.mxu0 0.0
  %404 = vmatprep.subr.mxu0 0.0
  %405 = vmatpush1.msra.mxu0 0.0
  %406 = vmatprep.subr.mxu0 0.0
  %407 = vmatpush1.msra.mxu0 0.0
  %408 = vmatprep.subr.mxu0 0.0
  %409 = vmatpush1.msra.mxu0 0.0
  %410 = vmatprep.subr.mxu0 0.0
  %411 = vmatpush1.msra.mxu0 %v26
  %412 = vmatprep.subr.mxu0 0.0
  %413 = vmatpush1.msra.mxu0 %v25
  %414 = vmatprep.subr.mxu0 0.0
  %415 = vmatpush1.msra.mxu0 %v24
  %416 = vmatprep.subr.mxu0 0.0
  %417 = vmatpush1.msra.mxu0 %v23
  %418 = vmatprep.subr.mxu0 0.0
  %419 = vmatpush2.msra.mxu0 0.0
  %420 = vmatprep.subr.mxu0 0.0
  %421 = vmatpush2.msra.mxu0 0.0
  %422 = vmatprep.subr.mxu0 0.0
  %423 = vmatpush2.msra.mxu0 0.0
  %424 = vmatprep.subr.mxu0 0.0
  %425 = vmatpush2.msra.mxu0 0.0
  %426 = vmatprep.subr.mxu0 0.0
  %427 = vmatpush2.msra.mxu0 0.0
  %428 = vmatprep.subr.mxu0 0.0
  %429 = vmatpush2.msra.mxu0 0.0
  %430 = vmatprep.subr.mxu0 0.0
  %431 = vmatpush2.msra.mxu0 0.0
  %432 = vmatprep.subr.mxu0 0.0
  %433 = vmatpush2.msra.mxu0 0.0
  %434 = vmatprep.subr.mxu0 0.0
  %435 = vmatpush2.msra.mxu0 0.0
  %436 = vmatprep.subr.mxu0 0.0
  %437 = vmatpush2.msra.mxu0 0.0
  %438 = vmatprep.subr.mxu0 0.0
  %439 = vmatpush2.msra.mxu0 0.0
  %440 = vmatprep.subr.mxu0 0.0
  %441 = vmatpush2.msra.mxu0 0.0
  %442 = vmatprep.subr.mxu0 0.0
  %443 = vmatpush2.msra.mxu0 0.0
  %444 = vmatprep.subr.mxu0 0.0
  %445 = vmatpush2.msra.mxu0 0.0
  %446 = vmatprep.subr.mxu0 0.0
  %447 = vmatpush2.msra.mxu0 0.0
  %448 = vmatprep.subr.mxu0 0.0
  %449 = vmatpush2.msra.mxu0 0.0
  %450 = vmatprep.mubr.f32.mxu0 0.0
  %451 = vmatmul.mubr.f32.gmra.mxu0 %v384
  %v452 = vpop.f32.mrf.mxu0
  %v453 = vadd.f32 0.0, %v452
  %v454 = vpop.f32.mrf.mxu0
  %455 = vdwg.mxu0
  %v456 = vadd.f32 %v145, %v453
  %v457 = vxor.u32 %v456, 2147483648
  %v458 = vmul.f32 %v457, 1.442695
  %v459 = vpow.pop %v458
  %v460 = vadd.f32 %v459, 1.0
  %v461 = vrcp.pop %v460
  %v462 = vmul.f32 1.0, %v461
  %v463 = vmul.f32 %v462, 2.0
  %v464 = vsub.f32 %v463, 1.0
  %v465 = vsel %vm177, %v464, %v462
  %v466 = vmul.f32 %v465, %v374
  %468 = vrot.lane.b32.xlu0 %v465, 64
  %v469 = vpop.permute.xlu0 %468
  %v471 = vmul.f32 %v465, %v469
  %473 = vrot.lane.b32.xlu0 %v471, 32
  %v474 = vpop.permute.xlu0 %473
  %v476 = vadd.f32 %v466, %v474
  %v477 = vtanh.pop %v476
  %479 = vrot.lane.b32.xlu0 %v477, 64
  %v480 = vpop.permute.xlu0 %479
  %v482 = vmul.f32 %v465, %v480
  %484 = vrot.lane.b32.xlu0 %v482, 32
  %v485 = vpop.permute.xlu0 %484
  %v486 = vsel %vm178, %v485, 0
  %488 = vmatprep.subr.mxu0 0.0
  %489 = vmatpush1.msra.mxu0 0.0
  %490 = vmatprep.subr.mxu0 0.0
  %491 = vmatpush1.msra.mxu0 0.0
  %492 = vmatprep.subr.mxu0 0.0
  %493 = vmatpush1.msra.mxu0 0.0
  %494 = vmatprep.subr.mxu0 0.0
  %495 = vmatpush1.msra.mxu0 0.0
  %496 = vmatprep.subr.mxu0 0.0
  %497 = vmatpush1.msra.mxu0 0.0
  %498 = vmatprep.subr.mxu0 0.0
  %499 = vmatpush1.msra.mxu0 0.0
  %500 = vmatprep.subr.mxu0 0.0
  %501 = vmatpush1.msra.mxu0 0.0
  %502 = vmatprep.subr.mxu0 0.0
  %503 = vmatpush1.msra.mxu0 0.0
  %504 = vmatprep.subr.mxu0 0.0
  %505 = vmatpush1.msra.mxu0 0.0
  %506 = vmatprep.subr.mxu0 0.0
  %507 = vmatpush1.msra.mxu0 0.0
  %508 = vmatprep.subr.mxu0 0.0
  %509 = vmatpush1.msra.mxu0 0.0
  %510 = vmatprep.subr.mxu0 0.0
  %511 = vmatpush1.msra.mxu0 0.0
  %512 = vmatprep.subr.mxu0 0.0
  %513 = vmatpush1.msra.mxu0 %v26
  %514 = vmatprep.subr.mxu0 0.0
  %515 = vmatpush1.msra.mxu0 %v25
  %516 = vmatprep.subr.mxu0 0.0
  %517 = vmatpush1.msra.mxu0 %v24
  %518 = vmatprep.subr.mxu0 0.0
  %519 = vmatpush1.msra.mxu0 %v23
  %520 = vmatprep.subr.mxu0 0.0
  %521 = vmatpush2.msra.mxu0 0.0
  %522 = vmatprep.subr.mxu0 0.0
  %523 = vmatpush2.msra.mxu0 0.0
  %524 = vmatprep.subr.mxu0 0.0
  %525 = vmatpush2.msra.mxu0 0.0
  %526 = vmatprep.subr.mxu0 0.0
  %527 = vmatpush2.msra.mxu0 0.0
  %528 = vmatprep.subr.mxu0 0.0
  %529 = vmatpush2.msra.mxu0 0.0
  %530 = vmatprep.subr.mxu0 0.0
  %531 = vmatpush2.msra.mxu0 0.0
  %532 = vmatprep.subr.mxu0 0.0
  %533 = vmatpush2.msra.mxu0 0.0
  %534 = vmatprep.subr.mxu0 0.0
  %535 = vmatpush2.msra.mxu0 0.0
  %536 = vmatprep.subr.mxu0 0.0
  %537 = vmatpush2.msra.mxu0 0.0
  %538 = vmatprep.subr.mxu0 0.0
  %539 = vmatpush2.msra.mxu0 0.0
  %540 = vmatprep.subr.mxu0 0.0
  %541 = vmatpush2.msra.mxu0 0.0
  %542 = vmatprep.subr.mxu0 0.0
  %543 = vmatpush2.msra.mxu0 0.0
  %544 = vmatprep.subr.mxu0 0.0
  %545 = vmatpush2.msra.mxu0 0.0
  %546 = vmatprep.subr.mxu0 0.0
  %547 = vmatpush2.msra.mxu0 0.0
  %548 = vmatprep.subr.mxu0 0.0
  %549 = vmatpush2.msra.mxu0 0.0
  %550 = vmatprep.subr.mxu0 0.0
  %551 = vmatpush2.msra.mxu0 0.0
  %552 = vmatprep.mubr.f32.mxu0 0.0
  %553 = vmatmul.mubr.f32.gmra.mxu0 %v486
  %v554 = vpop.f32.mrf.mxu0
  %v555 = vadd.f32 0.0, %v554
  %v556 = vpop.f32.mrf.mxu0
  %557 = vdwg.mxu0
  %v558 = vadd.f32 %v150, %v555
  %v559 = vxor.u32 %v558, 2147483648
  %v560 = vmul.f32 %v559, 1.442695
  %v561 = vpow.pop %v560
  %v562 = vadd.f32 %v561, 1.0
  %v563 = vrcp.pop %v562
  %v564 = vmul.f32 1.0, %v563
  %v565 = vmul.f32 %v564, 2.0
  %v566 = vsub.f32 %v565, 1.0
  %v567 = vsel %vm177, %v566, %v564
  %v568 = vmul.f32 %v567, %v476
  %570 = vrot.lane.b32.xlu0 %v567, 64
  %v571 = vpop.permute.xlu0 %570
  %v573 = vmul.f32 %v567, %v571
  %575 = vrot.lane.b32.xlu0 %v573, 32
  %v576 = vpop.permute.xlu0 %575
  %v578 = vadd.f32 %v568, %v576
  %v579 = vtanh.pop %v578
  %581 = vrot.lane.b32.xlu0 %v579, 64
  %v582 = vpop.permute.xlu0 %581
  %v584 = vmul.f32 %v567, %v582
  %586 = vrot.lane.b32.xlu0 %v584, 32
  %v587 = vpop.permute.xlu0 %586
  %v588 = vsel %vm178, %v587, 0
  %590 = vmatprep.subr.mxu0 0.0
  %591 = vmatpush1.msra.mxu0 0.0
  %592 = vmatprep.subr.mxu0 0.0
  %593 = vmatpush1.msra.mxu0 0.0
  %594 = vmatprep.subr.mxu0 0.0
  %595 = vmatpush1.msra.mxu0 0.0
  %596 = vmatprep.subr.mxu0 0.0
  %597 = vmatpush1.msra.mxu0 0.0
  %598 = vmatprep.subr.mxu0 0.0
  %599 = vmatpush1.msra.mxu0 0.0
  %600 = vmatprep.subr.mxu0 0.0
  %601 = vmatpush1.msra.mxu0 0.0
  %602 = vmatprep.subr.mxu0 0.0
  %603 = vmatpush1.msra.mxu0 0.0
  %604 = vmatprep.subr.mxu0 0.0
  %605 = vmatpush1.msra.mxu0 0.0
  %606 = vmatprep.subr.mxu0 0.0
  %607 = vmatpush1.msra.mxu0 0.0
  %608 = vmatprep.subr.mxu0 0.0
  %609 = vmatpush1.msra.mxu0 0.0
  %610 = vmatprep.subr.mxu0 0.0
  %611 = vmatpush1.msra.mxu0 0.0
  %612 = vmatprep.subr.mxu0 0.0
  %613 = vmatpush1.msra.mxu0 0.0
  %614 = vmatprep.subr.mxu0 0.0
  %615 = vmatpush1.msra.mxu0 %v26
  %616 = vmatprep.subr.mxu0 0.0
  %617 = vmatpush1.msra.mxu0 %v25
  %618 = vmatprep.subr.mxu0 0.0
  %619 = vmatpush1.msra.mxu0 %v24
  %620 = vmatprep.subr.mxu0 0.0
  %621 = vmatpush1.msra.mxu0 %v23
  %622 = vmatprep.subr.mxu0 0.0
  %623 = vmatpush2.msra.mxu0 0.0
  %624 = vmatprep.subr.mxu0 0.0
  %625 = vmatpush2.msra.mxu0 0.0
  %626 = vmatprep.subr.mxu0 0.0
  %627 = vmatpush2.msra.mxu0 0.0
  %628 = vmatprep.subr.mxu0 0.0
  %629 = vmatpush2.msra.mxu0 0.0
  %630 = vmatprep.subr.mxu0 0.0
  %631 = vmatpush2.msra.mxu0 0.0
  %632 = vmatprep.subr.mxu0 0.0
  %633 = vmatpush2.msra.mxu0 0.0
  %634 = vmatprep.subr.mxu0 0.0
  %635 = vmatpush2.msra.mxu0 0.0
  %636 = vmatprep.subr.mxu0 0.0
  %637 = vmatpush2.msra.mxu0 0.0
  %638 = vmatprep.subr.mxu0 0.0
  %639 = vmatpush2.msra.mxu0 0.0
  %640 = vmatprep.subr.mxu0 0.0
  %641 = vmatpush2.msra.mxu0 0.0
  %642 = vmatprep.subr.mxu0 0.0
  %643 = vmatpush2.msra.mxu0 0.0
  %644 = vmatprep.subr.mxu0 0.0
  %645 = vmatpush2.msra.mxu0 0.0
  %646 = vmatprep.subr.mxu0 0.0
  %647 = vmatpush2.msra.mxu0 0.0
  %648 = vmatprep.subr.mxu0 0.0
  %649 = vmatpush2.msra.mxu0 0.0
  %650 = vmatprep.subr.mxu0 0.0
  %651 = vmatpush2.msra.mxu0 0.0
  %652 = vmatprep.subr.mxu0 0.0
  %653 = vmatpush2.msra.mxu0 0.0
  %654 = vmatprep.mubr.f32.mxu0 0.0
  %655 = vmatmul.mubr.f32.gmra.mxu0 %v588
  %v656 = vpop.f32.mrf.mxu0
  %v657 = vadd.f32 0.0, %v656
  %v658 = vpop.f32.mrf.mxu0
  %659 = vdwg.mxu0
  %v660 = vadd.f32 %v155, %v657
  %v661 = vxor.u32 %v660, 2147483648
  %v662 = vmul.f32 %v661, 1.442695
  %v663 = vpow.pop %v662
  %v664 = vadd.f32 %v663, 1.0
  %v665 = vrcp.pop %v664
  %v666 = vmul.f32 1.0, %v665
  %v667 = vmul.f32 %v666, 2.0
  %v668 = vsub.f32 %v667, 1.0
  %v669 = vsel %vm177, %v668, %v666
  %v670 = vmul.f32 %v669, %v578
  %672 = vrot.lane.b32.xlu0 %v669, 64
  %v673 = vpop.permute.xlu0 %672
  %v675 = vmul.f32 %v669, %v673
  %677 = vrot.lane.b32.xlu0 %v675, 32
  %v678 = vpop.permute.xlu0 %677
  %v680 = vadd.f32 %v670, %v678
  %v681 = vtanh.pop %v680
  %683 = vrot.lane.b32.xlu0 %v681, 64
  %v684 = vpop.permute.xlu0 %683
  %v686 = vmul.f32 %v669, %v684
  %688 = vrot.lane.b32.xlu0 %v686, 32
  %v689 = vpop.permute.xlu0 %688
  %v690 = vsel %vm178, %v689, 0
  %692 = vmatprep.subr.mxu0 0.0
  %693 = vmatpush1.msra.mxu0 0.0
  %694 = vmatprep.subr.mxu0 0.0
  %695 = vmatpush1.msra.mxu0 0.0
  %696 = vmatprep.subr.mxu0 0.0
  %697 = vmatpush1.msra.mxu0 0.0
  %698 = vmatprep.subr.mxu0 0.0
  %699 = vmatpush1.msra.mxu0 0.0
  %700 = vmatprep.subr.mxu0 0.0
  %701 = vmatpush1.msra.mxu0 0.0
  %702 = vmatprep.subr.mxu0 0.0
  %703 = vmatpush1.msra.mxu0 0.0
  %704 = vmatprep.subr.mxu0 0.0
  %705 = vmatpush1.msra.mxu0 0.0
  %706 = vmatprep.subr.mxu0 0.0
  %707 = vmatpush1.msra.mxu0 0.0
  %708 = vmatprep.subr.mxu0 0.0
  %709 = vmatpush1.msra.mxu0 0.0
  %710 = vmatprep.subr.mxu0 0.0
  %711 = vmatpush1.msra.mxu0 0.0
  %712 = vmatprep.subr.mxu0 0.0
  %713 = vmatpush1.msra.mxu0 0.0
  %714 = vmatprep.subr.mxu0 0.0
  %715 = vmatpush1.msra.mxu0 0.0
  %716 = vmatprep.subr.mxu0 0.0
  %717 = vmatpush1.msra.mxu0 %v26
  %718 = vmatprep.subr.mxu0 0.0
  %719 = vmatpush1.msra.mxu0 %v25
  %720 = vmatprep.subr.mxu0 0.0
  %721 = vmatpush1.msra.mxu0 %v24
  %722 = vmatprep.subr.mxu0 0.0
  %723 = vmatpush1.msra.mxu0 %v23
  %724 = vmatprep.subr.mxu0 0.0
  %725 = vmatpush2.msra.mxu0 0.0
  %726 = vmatprep.subr.mxu0 0.0
  %727 = vmatpush2.msra.mxu0 0.0
  %728 = vmatprep.subr.mxu0 0.0
  %729 = vmatpush2.msra.mxu0 0.0
  %730 = vmatprep.subr.mxu0 0.0
  %731 = vmatpush2.msra.mxu0 0.0
  %732 = vmatprep.subr.mxu0 0.0
  %733 = vmatpush2.msra.mxu0 0.0
  %734 = vmatprep.subr.mxu0 0.0
  %735 = vmatpush2.msra.mxu0 0.0
  %736 = vmatprep.subr.mxu0 0.0
  %737 = vmatpush2.msra.mxu0 0.0
  %738 = vmatprep.subr.mxu0 0.0
  %739 = vmatpush2.msra.mxu0 0.0
  %740 = vmatprep.subr.mxu0 0.0
  %741 = vmatpush2.msra.mxu0 0.0
  %742 = vmatprep.subr.mxu0 0.0
  %743 = vmatpush2.msra.mxu0 0.0
  %744 = vmatprep.subr.mxu0 0.0
  %745 = vmatpush2.msra.mxu0 0.0
  %746 = vmatprep.subr.mxu0 0.0
  %747 = vmatpush2.msra.mxu0 0.0
  %748 = vmatprep.subr.mxu0 0.0
  %749 = vmatpush2.msra.mxu0 0.0
  %750 = vmatprep.subr.mxu0 0.0
  %751 = vmatpush2.msra.mxu0 0.0
  %752 = vmatprep.subr.mxu0 0.0
  %753 = vmatpush2.msra.mxu0 0.0
  %754 = vmatprep.subr.mxu0 0.0
  %755 = vmatpush2.msra.mxu0 0.0
  %756 = vmatprep.mubr.f32.mxu0 0.0
  %757 = vmatmul.mubr.f32.gmra.mxu0 %v690
  %v758 = vpop.f32.mrf.mxu0
  %v759 = vadd.f32 0.0, %v758
  %v760 = vpop.f32.mrf.mxu0
  %761 = vdwg.mxu0
  %v762 = vadd.f32 %v160, %v759
  %v763 = vxor.u32 %v762, 2147483648
  %v764 = vmul.f32 %v763, 1.442695
  %v765 = vpow.pop %v764
  %v766 = vadd.f32 %v765, 1.0
  %v767 = vrcp.pop %v766
  %v768 = vmul.f32 1.0, %v767
  %v769 = vmul.f32 %v768, 2.0
  %v770 = vsub.f32 %v769, 1.0
  %v771 = vsel %vm177, %v770, %v768
  %v772 = vmul.f32 %v771, %v680
  %774 = vrot.lane.b32.xlu0 %v771, 64
  %v775 = vpop.permute.xlu0 %774
  %v777 = vmul.f32 %v771, %v775
  %779 = vrot.lane.b32.xlu0 %v777, 32
  %v780 = vpop.permute.xlu0 %779
  %v782 = vadd.f32 %v772, %v780
  %v783 = vtanh.pop %v782
  %785 = vrot.lane.b32.xlu0 %v783, 64
  %v786 = vpop.permute.xlu0 %785
  %v788 = vmul.f32 %v771, %v786
  %790 = vrot.lane.b32.xlu0 %v788, 32
  %v791 = vpop.permute.xlu0 %790
  %v792 = vsel %vm178, %v791, 0
  %794 = vmatprep.subr.mxu0 0.0
  %795 = vmatpush1.msra.mxu0 0.0
  %796 = vmatprep.subr.mxu0 0.0
  %797 = vmatpush1.msra.mxu0 0.0
  %798 = vmatprep.subr.mxu0 0.0
  %799 = vmatpush1.msra.mxu0 0.0
  %800 = vmatprep.subr.mxu0 0.0
  %801 = vmatpush1.msra.mxu0 0.0
  %802 = vmatprep.subr.mxu0 0.0
  %803 = vmatpush1.msra.mxu0 0.0
  %804 = vmatprep.subr.mxu0 0.0
  %805 = vmatpush1.msra.mxu0 0.0
  %806 = vmatprep.subr.mxu0 0.0
  %807 = vmatpush1.msra.mxu0 0.0
  %808 = vmatprep.subr.mxu0 0.0
  %809 = vmatpush1.msra.mxu0 0.0
  %810 = vmatprep.subr.mxu0 0.0
  %811 = vmatpush1.msra.mxu0 0.0
  %812 = vmatprep.subr.mxu0 0.0
  %813 = vmatpush1.msra.mxu0 0.0
  %814 = vmatprep.subr.mxu0 0.0
  %815 = vmatpush1.msra.mxu0 0.0
  %816 = vmatprep.subr.mxu0 0.0
  %817 = vmatpush1.msra.mxu0 0.0
  %818 = vmatprep.subr.mxu0 0.0
  %819 = vmatpush1.msra.mxu0 %v26
  %820 = vmatprep.subr.mxu0 0.0
  %821 = vmatpush1.msra.mxu0 %v25
  %822 = vmatprep.subr.mxu0 0.0
  %823 = vmatpush1.msra.mxu0 %v24
  %824 = vmatprep.subr.mxu0 0.0
  %825 = vmatpush1.msra.mxu0 %v23
  %826 = vmatprep.subr.mxu0 0.0
  %827 = vmatpush2.msra.mxu0 0.0
  %828 = vmatprep.subr.mxu0 0.0
  %829 = vmatpush2.msra.mxu0 0.0
  %830 = vmatprep.subr.mxu0 0.0
  %831 = vmatpush2.msra.mxu0 0.0
  %832 = vmatprep.subr.mxu0 0.0
  %833 = vmatpush2.msra.mxu0 0.0
  %834 = vmatprep.subr.mxu0 0.0
  %835 = vmatpush2.msra.mxu0 0.0
  %836 = vmatprep.subr.mxu0 0.0
  %837 = vmatpush2.msra.mxu0 0.0
  %838 = vmatprep.subr.mxu0 0.0
  %839 = vmatpush2.msra.mxu0 0.0
  %840 = vmatprep.subr.mxu0 0.0
  %841 = vmatpush2.msra.mxu0 0.0
  %842 = vmatprep.subr.mxu0 0.0
  %843 = vmatpush2.msra.mxu0 0.0
  %844 = vmatprep.subr.mxu0 0.0
  %845 = vmatpush2.msra.mxu0 0.0
  %846 = vmatprep.subr.mxu0 0.0
  %847 = vmatpush2.msra.mxu0 0.0
  %848 = vmatprep.subr.mxu0 0.0
  %849 = vmatpush2.msra.mxu0 0.0
  %850 = vmatprep.subr.mxu0 0.0
  %851 = vmatpush2.msra.mxu0 0.0
  %852 = vmatprep.subr.mxu0 0.0
  %853 = vmatpush2.msra.mxu0 0.0
  %854 = vmatprep.subr.mxu0 0.0
  %855 = vmatpush2.msra.mxu0 0.0
  %856 = vmatprep.subr.mxu0 0.0
  %857 = vmatpush2.msra.mxu0 0.0
  %858 = vmatprep.mubr.f32.mxu0 0.0
  %859 = vmatmul.mubr.f32.gmra.mxu0 %v792
  %v860 = vpop.f32.mrf.mxu0
  %v861 = vadd.f32 0.0, %v860
  %v862 = vpop.f32.mrf.mxu0
  %863 = vdwg.mxu0
  %v864 = vadd.f32 %v165, %v861
  %v865 = vxor.u32 %v864, 2147483648
  %v866 = vmul.f32 %v865, 1.442695
  %v867 = vpow.pop %v866
  %v868 = vadd.f32 %v867, 1.0
  %v869 = vrcp.pop %v868
  %v870 = vmul.f32 1.0, %v869
  %v871 = vmul.f32 %v870, 2.0
  %v872 = vsub.f32 %v871, 1.0
  %v873 = vsel %vm177, %v872, %v870
  %v874 = vmul.f32 %v873, %v782
  %876 = vrot.lane.b32.xlu0 %v873, 64
  %v877 = vpop.permute.xlu0 %876
  %v879 = vmul.f32 %v873, %v877
  %881 = vrot.lane.b32.xlu0 %v879, 32
  %v882 = vpop.permute.xlu0 %881
  %v884 = vadd.f32 %v874, %v882
  %v885 = vtanh.pop %v884
  %887 = vrot.lane.b32.xlu0 %v885, 64
  %v888 = vpop.permute.xlu0 %887
  %v890 = vmul.f32 %v873, %v888
  %892 = vrot.lane.b32.xlu0 %v890, 32
  %v893 = vpop.permute.xlu0 %892
  %v894 = vsel %vm178, %v893, 0
  %896 = vmatprep.subr.mxu0 0.0
  %897 = vmatpush1.msra.mxu0 0.0
  %898 = vmatprep.subr.mxu0 0.0
  %899 = vmatpush1.msra.mxu0 0.0
  %900 = vmatprep.subr.mxu0 0.0
  %901 = vmatpush1.msra.mxu0 0.0
  %902 = vmatprep.subr.mxu0 0.0
  %903 = vmatpush1.msra.mxu0 0.0
  %904 = vmatprep.subr.mxu0 0.0
  %905 = vmatpush1.msra.mxu0 0.0
  %906 = vmatprep.subr.mxu0 0.0
  %907 = vmatpush1.msra.mxu0 0.0
  %908 = vmatprep.subr.mxu0 0.0
  %909 = vmatpush1.msra.mxu0 0.0
  %910 = vmatprep.subr.mxu0 0.0
  %911 = vmatpush1.msra.mxu0 0.0
  %912 = vmatprep.subr.mxu0 0.0
  %913 = vmatpush1.msra.mxu0 0.0
  %914 = vmatprep.subr.mxu0 0.0
  %915 = vmatpush1.msra.mxu0 0.0
  %916 = vmatprep.subr.mxu0 0.0
  %917 = vmatpush1.msra.mxu0 0.0
  %918 = vmatprep.subr.mxu0 0.0
  %919 = vmatpush1.msra.mxu0 0.0
  %920 = vmatprep.subr.mxu0 0.0
  %921 = vmatpush1.msra.mxu0 %v26
  %922 = vmatprep.subr.mxu0 0.0
  %923 = vmatpush1.msra.mxu0 %v25
  %924 = vmatprep.subr.mxu0 0.0
  %925 = vmatpush1.msra.mxu0 %v24
  %926 = vmatprep.subr.mxu0 0.0
  %927 = vmatpush1.msra.mxu0 %v23
  %928 = vmatprep.subr.mxu0 0.0
  %929 = vmatpush2.msra.mxu0 0.0
  %930 = vmatprep.subr.mxu0 0.0
  %931 = vmatpush2.msra.mxu0 0.0
  %932 = vmatprep.subr.mxu0 0.0
  %933 = vmatpush2.msra.mxu0 0.0
  %934 = vmatprep.subr.mxu0 0.0
  %935 = vmatpush2.msra.mxu0 0.0
  %936 = vmatprep.subr.mxu0 0.0
  %937 = vmatpush2.msra.mxu0 0.0
  %938 = vmatprep.subr.mxu0 0.0
  %939 = vmatpush2.msra.mxu0 0.0
  %940 = vmatprep.subr.mxu0 0.0
  %941 = vmatpush2.msra.mxu0 0.0
  %942 = vmatprep.subr.mxu0 0.0
  %943 = vmatpush2.msra.mxu0 0.0
  %944 = vmatprep.subr.mxu0 0.0
  %945 = vmatpush2.msra.mxu0 0.0
  %946 = vmatprep.subr.mxu0 0.0
  %947 = vmatpush2.msra.mxu0 0.0
  %948 = vmatprep.subr.mxu0 0.0
  %949 = vmatpush2.msra.mxu0 0.0
  %950 = vmatprep.subr.mxu0 0.0
  %951 = vmatpush2.msra.mxu0 0.0
  %952 = vmatprep.subr.mxu0 0.0
  %953 = vmatpush2.msra.mxu0 0.0
  %954 = vmatprep.subr.mxu0 0.0
  %955 = vmatpush2.msra.mxu0 0.0
  %956 = vmatprep.subr.mxu0 0.0
  %957 = vmatpush2.msra.mxu0 0.0
  %958 = vmatprep.subr.mxu0 0.0
  %959 = vmatpush2.msra.mxu0 0.0
  %960 = vmatprep.mubr.f32.mxu0 0.0
  %961 = vmatmul.mubr.f32.gmra.mxu0 %v894
  %v962 = vpop.f32.mrf.mxu0
  %v963 = vadd.f32 0.0, %v962
  %v964 = vpop.f32.mrf.mxu0
  %965 = vdwg.mxu0
  %v966 = vadd.f32 %v170, %v963
  %v967 = vxor.u32 %v966, 2147483648
  %v968 = vmul.f32 %v967, 1.442695
  %v969 = vpow.pop %v968
  %v970 = vadd.f32 %v969, 1.0
  %v971 = vrcp.pop %v970
  %v972 = vmul.f32 1.0, %v971
  %v973 = vmul.f32 %v972, 2.0
  %v974 = vsub.f32 %v973, 1.0
  %v975 = vsel %vm177, %v974, %v972
  %v976 = vmul.f32 %v975, %v884
  %978 = vrot.lane.b32.xlu0 %v975, 64
  %v979 = vpop.permute.xlu0 %978
  %v981 = vmul.f32 %v975, %v979
  %983 = vrot.lane.b32.xlu0 %v981, 32
  %v984 = vpop.permute.xlu0 %983
  %v986 = vadd.f32 %v976, %v984
  %v987 = vtanh.pop %v986
  %989 = vrot.lane.b32.xlu0 %v987, 64
  %v990 = vpop.permute.xlu0 %989
  %v992 = vmul.f32 %v975, %v990
  %v993 = vld [vmem:[%s4] sm:$0xff]
  %v994 = vld [vmem:[%s4 + $0x8] sm:$0xff]
  %v995 = vld [vmem:[%s4 + $0x10] sm:$0xff]
  %v996 = vld [vmem:[%s4 + $0x18] sm:$0xff]
  %v997 = vld [vmem:[%s5] sm:$0x1]
  %v999 = vlaneseq
  %v1000 = vshrl.u32 %v999, 7
  %v1001 = vsub.s32 0, %v1000
  %v1002 = vrot.slane %v997, %v1001
  %1005 = vrot.lane.b32.xlu0 %v992, 32
  %v1006 = vpop.permute.xlu0 %1005
  %v1007 = vsel %vm178, %v1006, 0
  %1009 = vmatprep.subr.mxu0 0.0
  %1010 = vmatpush1.msra.mxu0 0.0
  %1011 = vmatprep.subr.mxu0 0.0
  %1012 = vmatpush1.msra.mxu0 0.0
  %1013 = vmatprep.subr.mxu0 0.0
  %1014 = vmatpush1.msra.mxu0 0.0
  %1015 = vmatprep.subr.mxu0 0.0
  %1016 = vmatpush1.msra.mxu0 0.0
  %1017 = vmatprep.subr.mxu0 0.0
  %1018 = vmatpush1.msra.mxu0 0.0
  %1019 = vmatprep.subr.mxu0 0.0
  %1020 = vmatpush1.msra.mxu0 0.0
  %1021 = vmatprep.subr.mxu0 0.0
  %1022 = vmatpush1.msra.mxu0 0.0
  %1023 = vmatprep.subr.mxu0 0.0
  %1024 = vmatpush1.msra.mxu0 0.0
  %1025 = vmatprep.subr.mxu0 0.0
  %1026 = vmatpush1.msra.mxu0 0.0
  %1027 = vmatprep.subr.mxu0 0.0
  %1028 = vmatpush1.msra.mxu0 0.0
  %1029 = vmatprep.subr.mxu0 0.0
  %1030 = vmatpush1.msra.mxu0 0.0
  %1031 = vmatprep.subr.mxu0 0.0
  %1032 = vmatpush1.msra.mxu0 0.0
  %1033 = vmatprep.subr.mxu0 0.0
  %1034 = vmatpush1.msra.mxu0 %v996
  %1035 = vmatprep.subr.mxu0 0.0
  %1036 = vmatpush1.msra.mxu0 %v995
  %1037 = vmatprep.subr.mxu0 0.0
  %1038 = vmatpush1.msra.mxu0 %v994
  %1039 = vmatprep.subr.mxu0 0.0
  %1040 = vmatpush1.msra.mxu0 %v993
  %1041 = vmatprep.subr.mxu0 0.0
  %1042 = vmatpush2.msra.mxu0 0.0
  %1043 = vmatprep.subr.mxu0 0.0
  %1044 = vmatpush2.msra.mxu0 0.0
  %1045 = vmatprep.subr.mxu0 0.0
  %1046 = vmatpush2.msra.mxu0 0.0
  %1047 = vmatprep.subr.mxu0 0.0
  %1048 = vmatpush2.msra.mxu0 0.0
  %1049 = vmatprep.subr.mxu0 0.0
  %1050 = vmatpush2.msra.mxu0 0.0
  %1051 = vmatprep.subr.mxu0 0.0
  %1052 = vmatpush2.msra.mxu0 0.0
  %1053 = vmatprep.subr.mxu0 0.0
  %1054 = vmatpush2.msra.mxu0 0.0
  %1055 = vmatprep.subr.mxu0 0.0
  %1056 = vmatpush2.msra.mxu0 0.0
  %1057 = vmatprep.subr.mxu0 0.0
  %1058 = vmatpush2.msra.mxu0 0.0
  %1059 = vmatprep.subr.mxu0 0.0
  %1060 = vmatpush2.msra.mxu0 0.0
  %1061 = vmatprep.subr.mxu0 0.0
  %1062 = vmatpush2.msra.mxu0 0.0
  %1063 = vmatprep.subr.mxu0 0.0
  %1064 = vmatpush2.msra.mxu0 0.0
  %1065 = vmatprep.subr.mxu0 0.0
  %1066 = vmatpush2.msra.mxu0 0.0
  %1067 = vmatprep.subr.mxu0 0.0
  %1068 = vmatpush2.msra.mxu0 0.0
  %1069 = vmatprep.subr.mxu0 0.0
  %1070 = vmatpush2.msra.mxu0 0.0
  %1071 = vmatprep.subr.mxu0 0.0
  %1072 = vmatpush2.msra.mxu0 0.0
  %1073 = vmatprep.mubr.f32.mxu0 0.0
  %1074 = vmatmul.mubr.f32.gmra.mxu0 %v1007
  %v1075 = vpop.f32.mrf.mxu0
  %v1076 = vadd.f32 %v1002, %v1075
  %v1077 = vpop.f32.mrf.mxu0
  %1078 = vdwg.mxu0
  %1079 = vst [vmem:[%s6] sm:$0xff] %v1076
  // Predicated region
  $region26: #{lstm_model_forward.1} parent=0 // pred_check
    _
  $region27: #{lstm_model_forward.1} parent=0 // pred_check_branch
    %1081 = sbr.rel (0) target = $region29
  $region28: #{lstm_model_forward.1} parent=0 // pred_region
    _
  $region29: #{lstm_model_forward.1} parent=0 // pred_fallthru
    _
  // Predicated region
  $region30: #{lstm_model_forward.1} parent=0 // pred_check
    _
  $region31: #{lstm_model_forward.1} parent=0 // pred_check_branch
    %1083 = sbr.rel (0) target = $region33
  $region32: #{lstm_model_forward.1} parent=0 // pred_region
    _
  $region33: #{lstm_model_forward.1} parent=0 // pred_fallthru
    _

</llo_original>
